<compile_context>
chip_gen: v7x
topology: tpu7x:2x2x1
jax: 0.10.0
libtpu: 0.0.40
codegen_flags: <defaults>
</compile_context>

<pallas_src>
import jax
import jax.numpy as jnp
from jax.experimental import pallas as pl
from jax.experimental.pallas import tpu as pltpu


def _round_up(x, m):
    return ((x + m - 1) // m) * m


def mlp_disc_kernel(x_ref, w1_ref, b1_ref, w2_ref, b2_ref, o_ref):
    # x_ref : (TM, Din)    VMEM, streamed per grid step
    # w1_ref: (Din, Dout)  VMEM, resident across the grid
    # b1_ref: (1, Dout)    VMEM, resident
    # w2_ref: (1, Dout)    VMEM, resident (second-layer weight as a row)
    # b2_ref: (1, 1)       SMEM scalar
    # o_ref : (1, 1, TM)   VMEM, lane-dense output block (batch on lanes)

    # Layer 1 on the MXU, f32 accumulation.
    h = jnp.dot(x_ref[...], w1_ref[...],
                preferred_element_type=jnp.float32)          # (TM, Dout)
    h = h + b1_ref[...]
    h = jnp.where(h >= 0.0, h, 0.1 * h)                      # LeakyReLU(0.1), VPU

    # Layer 2 (Dout -> 1), lane-dense: (1, Dout) @ (TM, Dout)^T -> (1, TM).
    # Contracting the rhs on its last dim is the native MXU transposed-rhs
    # path (same pattern as q @ k^T in attention), so no XLU transpose of the
    # big tile is needed and the batch ends up on the lane axis.
    z = jax.lax.dot_general(
        w2_ref[...], h,
        dimension_numbers=(((1,), (1,)), ((), ())),
        preferred_element_type=jnp.float32)                  # (1, TM)
    z = z + b2_ref[0, 0]

    # Sigmoid on the lane-dense row: only TM/128 vregs through the EUP, and an
    # exact (non-approx) reciprocal since the EUP now has plenty of slack.
    sig = 1.0 / (1.0 + jnp.exp(-z))                          # (1, TM)
    o_ref[...] = sig[None].astype(o_ref.dtype)               # unmasked, full-width vst


def linear_regression_model_forward(x, w1, b1, w2_row, b2, *, block_m=16384):
    """x: (B, in_features) -> (B, 1) sigmoid scores.

    Parameter layout (pre-transposed relative to PyTorch):
      w1: (in, out)   [= disc[0].weight.T]
      b1: (1, out)    [= disc[0].bias[None, :]]
      w2_row: (1, out)[= disc[2].weight]
      b2: (1, 1)      [= disc[2].bias[None, :]]
    """
    B, Din = x.shape
    Dout = w1.shape[1]

    # Tile selection: as large as VMEM allows (amortizes ~0.35us/step grid
    # overhead), but at least 2 tiles for big batches so both v7x TensorCores
    # get work. TM is a multiple of 8 (sublane); no padding of x is done —
    # the last block may be ragged and Pallas masks it.
    block_m = max(8, _round_up(block_m, 8))
    if B > 1024:
        TM = min(block_m, _round_up(pl.cdiv(B, 2), 128))
    else:
        TM = min(block_m, _round_up(B, 8))
    num_tiles = pl.cdiv(B, TM)
    Bp = num_tiles * TM

    itemsize = jnp.dtype(x.dtype).itemsize
    cost = pl.CostEstimate(
        flops=int(2 * Bp * Din * Dout + 2 * Bp * Dout),
        transcendentals=int(Bp),
        bytes_accessed=int(Bp * Din * itemsize + Bp * 4
                           + (Din * Dout + 2 * Dout + 1) * 4),
    )

    out = pl.pallas_call(
        mlp_disc_kernel,
        out_shape=jax.ShapeDtypeStruct((num_tiles, 1, TM), jnp.float32),
        grid=(num_tiles,),
        in_specs=[
            pl.BlockSpec((TM, Din), lambda i: (i, 0)),           # x: streamed
            pl.BlockSpec((Din, Dout), lambda i: (0, 0)),         # w1: resident
            pl.BlockSpec((1, Dout), lambda i: (0, 0)),           # b1: resident
            pl.BlockSpec((1, Dout), lambda i: (0, 0)),           # w2 row: resident
            pl.BlockSpec(memory_space=pltpu.MemorySpace.SMEM),   # b2 scalar
        ],
        out_specs=pl.BlockSpec((1, 1, TM), lambda i: (i, 0, 0)), # lane-dense row per tile
        compiler_params=pltpu.CompilerParams(
            dimension_semantics=("parallel",),
            # x buffers: 2 x TM*128*4 B (lane padding 32->128) = 16 MiB at
            # TM=16384; intermediates add ~8-16 MiB. 48 MiB fits every
            # generation's physical VMEM (v7x: 64 MiB).
            vmem_limit_bytes=48 * 1024 * 1024,
        ),
        cost_estimate=cost,
    )(x, w1, b1, w2_row, b2)

    # (num_tiles, 1, TM) -> (Bp, 1); drop the (never-valid) ragged tail rows.
    return out.reshape(Bp, 1)[:B]


def init_params(key, in_features, out_features):
    """Deterministic init mimicking PyTorch nn.Linear's U(-1/sqrt(fan_in), ...)."""
    k1, k2, k3, k4 = jax.random.split(key, 4)
    bound1 = 1.0 / jnp.sqrt(jnp.float32(in_features))
    bound2 = 1.0 / jnp.sqrt(jnp.float32(out_features))
    w1 = jax.random.uniform(k1, (in_features, out_features), jnp.float32, -bound1, bound1)
    b1 = jax.random.uniform(k2, (1, out_features), jnp.float32, -bound1, bound1)
    w2 = jax.random.uniform(k3, (1, out_features), jnp.float32, -bound2, bound2)
    b2 = jax.random.uniform(k4, (1, 1), jnp.float32, -bound2, bound2)
    return w1, b1, w2, b2


if __name__ == "__main__":
    in_features = 32
    out_features = 16
    # batch deliberately NOT a multiple of the tile so the ragged-last-block
    # path (which replaced the wrapper pad) is exercised.
    batch = 100

    key = jax.random.PRNGKey(0)
    kx, kp = jax.random.split(key)
    x = jax.random.normal(kx, (batch, in_features), dtype=jnp.float32)
    w1, b1, w2_row, b2 = init_params(kp, in_features, out_features)

    # block_m=32 keeps the test small while exercising a multi-step grid with a
    # ragged final tile (production default block_m=16384).
    out = linear_regression_model_forward(x, w1, b1, w2_row, b2, block_m=32)
    out = jax.block_until_ready(out)

    # Reference in plain JAX.
    h_ref = x @ w1 + b1
    h_ref = jnp.where(h_ref >= 0.0, h_ref, 0.1 * h_ref)
    ref = jax.nn.sigmoid(h_ref @ w2_row.T + b2)

    assert out.shape == (batch, 1)
    assert jnp.allclose(out, ref, atol=2e-3, rtol=2e-3), float(jnp.max(jnp.abs(out - ref)))

    print("KERNEL_OK")
</pallas_src>

<mosaic_0001>
module attributes {stable_mosaic.version = 11 : i64} {
  func.func @mlp_disc_kernel(%arg0: i32, %arg1: memref<32x32xf32, #tpu.memory_space<vmem>>, %arg2: memref<32x16xf32, #tpu.memory_space<vmem>>, %arg3: memref<1x16xf32, #tpu.memory_space<vmem>>, %arg4: memref<1x16xf32, #tpu.memory_space<vmem>>, %arg5: memref<1x1xf32, #tpu.memory_space<smem>>, %arg6: memref<1x1x32xf32, #tpu.memory_space<vmem>>) attributes {dimension_semantics = [#tpu.dimension_semantics<parallel>], iteration_bounds = array<i64: 4>, scalar_prefetch = 0 : i64, scratch_operands = 0 : i64, tpu.core_type = #tpu.core_type<tc>, window_params = [{transform_indices = @transform_0, window_bounds = array<i64: 32, 32>}, {pipeline_mode = #tpu.pipeline_mode<synchronous>, transform_indices = @transform_1, window_bounds = array<i64: 32, 16>}, {pipeline_mode = #tpu.pipeline_mode<synchronous>, transform_indices = @transform_2, window_bounds = array<i64: 1, 16>}, {pipeline_mode = #tpu.pipeline_mode<synchronous>, transform_indices = @transform_3, window_bounds = array<i64: 1, 16>}, {transform_indices = @transform_4, window_bounds = array<i64: 1, 1>}, {transform_indices = @transform_5, window_bounds = array<i64: 1, 1, 32>}]} {
    %c0 = arith.constant 0 : index
    %c0_0 = arith.constant 0 : index
    %0 = vector.load %arg1[%c0, %c0_0] : memref<32x32xf32, #tpu.memory_space<vmem>>, vector<32x32xf32>
    %c0_1 = arith.constant 0 : index
    %c0_2 = arith.constant 0 : index
    %1 = vector.load %arg2[%c0_1, %c0_2] : memref<32x16xf32, #tpu.memory_space<vmem>>, vector<32x16xf32>
    %cst = arith.constant dense<0.000000e+00> : vector<32x16xf32>
    %2 = tpu.matmul %0, %1, %cst {dimension_numbers = #tpu.dot_dimension_numbers<[1], [0], [0], [1], [0, 0, 1, 1], [], []>} : vector<32x32xf32>, vector<32x16xf32>, vector<32x16xf32> -> vector<32x16xf32>
    %c0_3 = arith.constant 0 : index
    %c0_4 = arith.constant 0 : index
    %3 = vector.load %arg3[%c0_3, %c0_4] : memref<1x16xf32, #tpu.memory_space<vmem>>, vector<1x16xf32>
    %4 = vector.broadcast %3 : vector<1x16xf32> to vector<32x16xf32>
    %5 = arith.addf %2, %4 : vector<32x16xf32>
    %cst_5 = arith.constant 0.000000e+00 : f32
    %6 = vector.broadcast %cst_5 : f32 to vector<32x16xf32>
    %7 = arith.cmpf oge, %5, %6 : vector<32x16xf32>
    %cst_6 = arith.constant 1.000000e-01 : f32
    %8 = vector.broadcast %cst_6 : f32 to vector<32x16xf32>
    %9 = arith.mulf %8, %5 : vector<32x16xf32>
    %10 = arith.select %7, %5, %9 : vector<32x16xi1>, vector<32x16xf32>
    %c0_7 = arith.constant 0 : index
    %c0_8 = arith.constant 0 : index
    %11 = vector.load %arg4[%c0_7, %c0_8] : memref<1x16xf32, #tpu.memory_space<vmem>>, vector<1x16xf32>
    %cst_9 = arith.constant dense<0.000000e+00> : vector<1x32xf32>
    %12 = tpu.matmul %11, %10, %cst_9 {dimension_numbers = #tpu.dot_dimension_numbers<[1], [1], [0], [0], [0, 0, 1, 0], [], []>} : vector<1x16xf32>, vector<32x16xf32>, vector<1x32xf32> -> vector<1x32xf32>
    %c0_10 = arith.constant 0 : index
    %c0_11 = arith.constant 0 : index
    %13 = memref.load %arg5[%c0_10, %c0_11] : memref<1x1xf32, #tpu.memory_space<smem>>
    %14 = vector.broadcast %13 : f32 to vector<1x32xf32>
    %15 = arith.addf %12, %14 : vector<1x32xf32>
    %cst_12 = arith.constant 0.000000e+00 : f32
    %16 = vector.broadcast %cst_12 : f32 to vector<1x32xf32>
    %17 = arith.subf %16, %15 : vector<1x32xf32>
    %18 = math.exp %17 : vector<1x32xf32>
    %cst_13 = arith.constant 1.000000e+00 : f32
    %19 = vector.broadcast %cst_13 : f32 to vector<1x32xf32>
    %20 = arith.addf %19, %18 : vector<1x32xf32>
    %cst_14 = arith.constant 1.000000e+00 : f32
    %21 = vector.broadcast %cst_14 : f32 to vector<1x32xf32>
    %22 = arith.divf %21, %20 : vector<1x32xf32>
    %23 = vector.shape_cast %22 : vector<1x32xf32> to vector<1x1x32xf32>
    %c0_15 = arith.constant 0 : index
    %c0_16 = arith.constant 0 : index
    %c0_17 = arith.constant 0 : index
    %24 = vector.load %arg6[%c0_15, %c0_16, %c0_17] : memref<1x1x32xf32, #tpu.memory_space<vmem>>, vector<1x1x32xf32>
    tpu.vector_store %arg6[%c0_15, %c0_16, %c0_17], %23 {strides = array<i32>} : memref<1x1x32xf32, #tpu.memory_space<vmem>>, vector<1x1x32xf32>,
    return
  }
  func.func @transform_0(%arg0: i32) -> (i32, i32) {
    %c0_i32 = arith.constant 0 : i32
    %c0_i32_0 = arith.constant 0 : i32
    return %arg0, %c0_i32 : i32, i32
  }
  func.func @transform_1(%arg0: i32) -> (i32, i32) {
    %c0_i32 = arith.constant 0 : i32
    %c0_i32_0 = arith.constant 0 : i32
    %c0_i32_1 = arith.constant 0 : i32
    return %c0_i32, %c0_i32_0 : i32, i32
  }
  func.func @transform_2(%arg0: i32) -> (i32, i32) {
    %c0_i32 = arith.constant 0 : i32
    %c0_i32_0 = arith.constant 0 : i32
    %c0_i32_1 = arith.constant 0 : i32
    return %c0_i32, %c0_i32_0 : i32, i32
  }
  func.func @transform_3(%arg0: i32) -> (i32, i32) {
    %c0_i32 = arith.constant 0 : i32
    %c0_i32_0 = arith.constant 0 : i32
    %c0_i32_1 = arith.constant 0 : i32
    return %c0_i32, %c0_i32_0 : i32, i32
  }
  func.func @transform_4(%arg0: i32) -> (i32, i32) {
    %c0_i32 = arith.constant 0 : i32
    %c0_i32_0 = arith.constant 0 : i32
    %c0_i32_1 = arith.constant 0 : i32
    return %c0_i32, %c0_i32_0 : i32, i32
  }
  func.func @transform_5(%arg0: i32) -> (i32, i32, i32) {
    %c0_i32 = arith.constant 0 : i32
    %c0_i32_0 = arith.constant 0 : i32
    %c0_i32_1 = arith.constant 0 : i32
    return %arg0, %c0_i32, %c0_i32_0 : i32, i32, i32
  }
}

</mosaic_0001>

<llo_original>
// kernel: tpu_custom_call.1
$region0: #{tpu_custom_call.1}
  #allocation0 [shape = 'u32[]', space=smem, size = 0x4, offset = 0x4, fixed_abs, tag = 'smem constant byte address 0x4 - core index']
  #allocation1 [shape = 'u32[144,128]{1,0:T(1,128)}', space=vmem, size = 0x12000, scoped, tag = 'internal scratch']
  #allocation2 [shape = 'f32[1,1]{1,0:T(1,128)S(6)}', space=smem, size = 0x200, scoped, tag = 'scoped memory for tpu_custom_call.1']
  %s0 = inlined_call_operand.vmem [shape: f32[100,32], index: 0, kind: input, shape index: {}]
  %s1 = inlined_call_operand.vmem [shape: f32[32,16], index: 1, kind: input, shape index: {}]
  %s2 = inlined_call_operand.vmem [shape: f32[1,16], index: 2, kind: input, shape index: {}]
  %s3 = inlined_call_operand.vmem [shape: f32[1,16], index: 3, kind: input, shape index: {}]
  %s4 = inlined_call_operand.<no memory space> [shape: f32[1,1], index: 4, kind: input, shape index: {}]
  %s5 = inlined_call_operand.hbm [shape: f32[4,1,32], index: 5, kind: output, shape index: {}]
  %s6 = sld [smem:[#allocation0]]
  $region53: #{tpu_custom_call.1} parent=0
    _
  %s8 = ssub.s32 1, %s6
  %s9 = scalar_select 0, %s8, %s6
  %10 = sst [smem:[#allocation2]] %s4
  $region1: #{tpu_custom_call.1} parent=0
    #allocation3 [shape = 'u8[1024]{0}', space=vmem, size = 0x400, scoped, tag = 'output window, operand 0']
    #allocation4 [shape = 's32[2]{0}', space=sflag, size = 0x8, scoped, tag = 'scoped memory for tpu_custom_call.1']
    %11 = vsyncpa [#allocation4], 0
    %s12 = scalar_lea.sflag [#allocation4], 1
    %13 = vsyncpa %s12, 0
    loop: start=0, step=1, limit=6
    $region2: #{tpu_custom_call.1} parent=1 // loop_pre_header
      _
    $region3: #{tpu_custom_call.1} parent=1 // loop_header
      %s15 = sphi 0, %s19
      %p16 = scmp.ge.s32.totalorder %s15, 6
      %s25 = sphi 0, %s27
      %s28 = sphi 0, %s25
      %s29 = sphi 0, %s28
      %s45 = sphi 0, %s29
      %s49 = sphi 0, %s49
      %s51 = sphi 0, %s49
      %s52 = sphi 0, %s51
      %s66 = sphi 0, %s52
      %s70 = sphi 0, %s70
      %s72 = sphi 0, %s70
      %s73 = sphi 0, %s72
      %s87 = sphi 0, %s73
      %s91 = sphi 0, %s91
      %s93 = sphi 0, %s91
      %s94 = sphi 0, %s93
      %s108 = sphi 0, %s94
      %s112 = sphi 0, %s112
      %s114 = sphi 0, %s112
      %s115 = sphi 0, %s114
      %s129 = sphi 0, %s115
      %s135 = sphi 0, %s137
      %s138 = sphi 0, %s135
      %s139 = sphi 0, %s138
      %s155 = sphi 0, %s139
    $region4: #{tpu_custom_call.1} parent=1 // loop_header_branch
      %18 = sbr.rel (%p16) target = $region8
    $region5: #{tpu_custom_call.1} parent=1 // loop_body
      %s20 = ssub.s32 %s15, 1
      %s21 = ssub.s32 %s15, 2
      %s22 = sadd.s32 %s15, 1
      %s23 = ssub.s32 %s15, %s22
      %p24 = scmp.eq.s32.totalorder %s23, 0
      %s26 = sadd.s32 %s25, 1
      %s27 = scalar_select %p24, %s25, %s26
      %p30 = pneg %p24
      %p31 = scmp.eq.s32.totalorder %s15, 3
      %p32 = por %p30, %p31
      %p33 = scmp.ne.s32.totalorder %s25, %s28
      %p34 = scmp.eq.s32.totalorder %s15, 0
      %p35 = por %p33, %p34
      %p36 = scmp.ne.s32.totalorder %s25, %s28
      %p37 = scmp.eq.s32.totalorder %s20, 3
      %p38 = por %p36, %p37
      %p39 = scmp.ne.s32.totalorder %s28, %s29
      %p40 = scmp.eq.s32.totalorder %s20, 0
      %p41 = por %p39, %p40
      %p42 = scmp.ne.s32.totalorder %s28, %s29
      %p43 = scmp.eq.s32.totalorder %s21, 3
      %p44 = por %p42, %p43
      %p46 = scmp.ne.s32.totalorder %s29, %s45
      %p47 = scmp.eq.s32.totalorder %s21, 0
      %p48 = por %p46, %p47
      %s50 = sadd.s32 %s49, 1
      %p53 = scmp.eq.s32.totalorder %s15, 3
      %p54 = scmp.ne.s32.totalorder %s49, %s51
      %p55 = scmp.eq.s32.totalorder %s15, 0
      %p56 = por %p54, %p55
      %p57 = scmp.ne.s32.totalorder %s49, %s51
      %p58 = scmp.eq.s32.totalorder %s20, 3
      %p59 = por %p57, %p58
      %p60 = scmp.ne.s32.totalorder %s51, %s52
      %p61 = scmp.eq.s32.totalorder %s20, 0
      %p62 = por %p60, %p61
      %p63 = scmp.ne.s32.totalorder %s51, %s52
      %p64 = scmp.eq.s32.totalorder %s21, 3
      %p65 = por %p63, %p64
      %p67 = scmp.ne.s32.totalorder %s52, %s66
      %p68 = scmp.eq.s32.totalorder %s21, 0
      %p69 = por %p67, %p68
      %s71 = sadd.s32 %s70, 1
      %p74 = scmp.eq.s32.totalorder %s15, 3
      %p75 = scmp.ne.s32.totalorder %s70, %s72
      %p76 = scmp.eq.s32.totalorder %s15, 0
      %p77 = por %p75, %p76
      %p78 = scmp.ne.s32.totalorder %s70, %s72
      %p79 = scmp.eq.s32.totalorder %s20, 3
      %p80 = por %p78, %p79
      %p81 = scmp.ne.s32.totalorder %s72, %s73
      %p82 = scmp.eq.s32.totalorder %s20, 0
      %p83 = por %p81, %p82
      %p84 = scmp.ne.s32.totalorder %s72, %s73
      %p85 = scmp.eq.s32.totalorder %s21, 3
      %p86 = por %p84, %p85
      %p88 = scmp.ne.s32.totalorder %s73, %s87
      %p89 = scmp.eq.s32.totalorder %s21, 0
      %p90 = por %p88, %p89
      %s92 = sadd.s32 %s91, 1
      %p95 = scmp.eq.s32.totalorder %s15, 3
      %p96 = scmp.ne.s32.totalorder %s91, %s93
      %p97 = scmp.eq.s32.totalorder %s15, 0
      %p98 = por %p96, %p97
      %p99 = scmp.ne.s32.totalorder %s91, %s93
      %p100 = scmp.eq.s32.totalorder %s20, 3
      %p101 = por %p99, %p100
      %p102 = scmp.ne.s32.totalorder %s93, %s94
      %p103 = scmp.eq.s32.totalorder %s20, 0
      %p104 = por %p102, %p103
      %p105 = scmp.ne.s32.totalorder %s93, %s94
      %p106 = scmp.eq.s32.totalorder %s21, 3
      %p107 = por %p105, %p106
      %p109 = scmp.ne.s32.totalorder %s94, %s108
      %p110 = scmp.eq.s32.totalorder %s21, 0
      %p111 = por %p109, %p110
      %s113 = sadd.s32 %s112, 1
      %p116 = scmp.eq.s32.totalorder %s15, 3
      %p117 = scmp.ne.s32.totalorder %s112, %s114
      %p118 = scmp.eq.s32.totalorder %s15, 0
      %p119 = por %p117, %p118
      %p120 = scmp.ne.s32.totalorder %s112, %s114
      %p121 = scmp.eq.s32.totalorder %s20, 3
      %p122 = por %p120, %p121
      %p123 = scmp.ne.s32.totalorder %s114, %s115
      %p124 = scmp.eq.s32.totalorder %s20, 0
      %p125 = por %p123, %p124
      %p126 = scmp.ne.s32.totalorder %s114, %s115
      %p127 = scmp.eq.s32.totalorder %s21, 3
      %p128 = por %p126, %p127
      %p130 = scmp.ne.s32.totalorder %s115, %s129
      %p131 = scmp.eq.s32.totalorder %s21, 0
      %p132 = por %p130, %p131
      %s133 = ssub.s32 %s15, %s22
      %p134 = scmp.eq.s32.totalorder %s133, 0
      %s136 = sadd.s32 %s135, 1
      %s137 = scalar_select %p134, %s135, %s136
      %p140 = pneg %p134
      %p141 = scmp.eq.s32.totalorder %s15, 3
      %p142 = por %p140, %p141
      %p143 = scmp.ne.s32.totalorder %s135, %s138
      %p144 = scmp.eq.s32.totalorder %s15, 0
      %p145 = por %p143, %p144
      %p146 = scmp.ne.s32.totalorder %s135, %s138
      %p147 = scmp.eq.s32.totalorder %s20, 3
      %p148 = por %p146, %p147
      %p149 = scmp.ne.s32.totalorder %s138, %s139
      %p150 = scmp.eq.s32.totalorder %s20, 0
      %p151 = por %p149, %p150
      %p152 = scmp.ne.s32.totalorder %s138, %s139
      %p153 = scmp.eq.s32.totalorder %s21, 3
      %p154 = por %p152, %p153
      %p156 = scmp.ne.s32.totalorder %s139, %s155
      %p157 = scmp.eq.s32.totalorder %s21, 0
      %p158 = por %p156, %p157
      %p159 = scmp.le.s32.totalorder 1, %s15
      %p160 = scmp.lt.s32.totalorder %s15, 5
      %p161 = pnand %p159, %p160
      %p162 = pneg %p161
      // Predicated region
      $region9: #{tpu_custom_call.1} parent=5 // pred_check
        _
      $region10: #{tpu_custom_call.1} parent=5 // pred_check_branch
        %164 = sbr.rel (%p161) target = $region12
      $region11: #{tpu_custom_call.1} parent=5 // pred_region
        %s165 = ssub.s32 %s15, 1
        // Predicated region
        $region13: #{tpu_custom_call.1} parent=11 // pred_check
          %p166 = pneg %p62
        $region14: #{tpu_custom_call.1} parent=11 // pred_check_branch
          %168 = sbr.rel (%p166) target = $region16
        $region15: #{tpu_custom_call.1} parent=11 // pred_region
          _
        $region16: #{tpu_custom_call.1} parent=11 // pred_fallthru
          _
        // Predicated region
        $region17: #{tpu_custom_call.1} parent=11 // pred_check
          %p169 = pneg %p83
        $region18: #{tpu_custom_call.1} parent=11 // pred_check_branch
          %171 = sbr.rel (%p169) target = $region20
        $region19: #{tpu_custom_call.1} parent=11 // pred_region
          _
        $region20: #{tpu_custom_call.1} parent=11 // pred_fallthru
          _
        // Predicated region
        $region21: #{tpu_custom_call.1} parent=11 // pred_check
          %p172 = pneg %p104
        $region22: #{tpu_custom_call.1} parent=11 // pred_check_branch
          %174 = sbr.rel (%p172) target = $region24
        $region23: #{tpu_custom_call.1} parent=11 // pred_region
          _
        $region24: #{tpu_custom_call.1} parent=11 // pred_fallthru
          _
        // Predicated region
        $region25: #{tpu_custom_call.1} parent=11 // pred_check
          %p175 = pneg %p125
        $region26: #{tpu_custom_call.1} parent=11 // pred_check_branch
          %177 = sbr.rel (%p175) target = $region28
        $region27: #{tpu_custom_call.1} parent=11 // pred_region
          _
        $region28: #{tpu_custom_call.1} parent=11 // pred_fallthru
          _
      $region12: #{tpu_custom_call.1} parent=5 // pred_fallthru
        _
      %p178 = scmp.lt.s32.totalorder %s15, 4
      // Predicated region
      $region29: #{tpu_custom_call.1} parent=5 // pred_check
        %p179 = pneg %p178
      $region30: #{tpu_custom_call.1} parent=5 // pred_check_branch
        %181 = sbr.rel (%p179) target = $region32
      $region31: #{tpu_custom_call.1} parent=5 // pred_region
        // Predicated region
        $region33: #{tpu_custom_call.1} parent=31 // pred_check
          %p182 = pneg %p35
        $region34: #{tpu_custom_call.1} parent=31 // pred_check_branch
          %184 = sbr.rel (%p182) target = $region36
        $region35: #{tpu_custom_call.1} parent=31 // pred_region
          %s185 = smul.u32 4, %s15
          %s186 = ssub.s32 13, %s185
          %p187 = scmp.lt.s32.totalorder %s186, 4
          %s188 = scalar_select %p187, %s186, 4
          %s189 = smul.u32 128, %s188
          %p190 = scmp.lt.s32.totalorder %s185, 12
          %s191 = scalar_select %p190, %s185, 12
          %s192 = smul.addr %s191, 8
          %s193 = scalar_lea.vmem %s0, %s192
          %s194 = smul.u32 4, %s15
          %s195 = ssub.s32 13, %s194
          %p196 = scmp.lt.s32.totalorder %s195, 4
          %s197 = scalar_select %p196, %s195, 4
          %s198 = smul.u32 128, %s197
        $region36: #{tpu_custom_call.1} parent=31 // pred_fallthru
          _
      $region32: #{tpu_custom_call.1} parent=5 // pred_fallthru
        _
      %p199 = scmp.le.s32.totalorder 1, %s15
      %p200 = scmp.lt.s32.totalorder %s15, 5
      %p201 = pnand %p199, %p200
      %p202 = pneg %p201
      // Predicated region
      $region37: #{tpu_custom_call.1} parent=5 // pred_check
        _
      $region38: #{tpu_custom_call.1} parent=5 // pred_check_branch
        %204 = sbr.rel (%p201) target = $region40
      $region39: #{tpu_custom_call.1} parent=5 // pred_region
        %s205 = ssub.s32 %s15, 1
        %s206 = smul.u32 4, %s20
        %s207 = ssub.s32 13, %s206
        %p208 = scmp.lt.s32.totalorder %s207, 4
        %s209 = scalar_select %p208, %s207, 4
        %s210 = smul.u32 128, %s209
        %p211 = scmp.lt.s32.totalorder %s206, 12
        %s212 = scalar_select %p211, %s206, 12
        %s213 = smul.addr %s212, 8
        %s214 = scalar_lea.vmem %s0, %s213
        %p215 = pneg %p41
        %p216 = pneg %p38
        %p217 = pneg %p62
        %p218 = pneg %p59
        %p219 = pneg %p83
        %p220 = pneg %p80
        %p221 = pneg %p104
        %p222 = pneg %p101
        %p223 = pneg %p125
        %p224 = pneg %p122
        %p225 = pneg %p151
        %p226 = pneg %p148
        %s227 = sand.u32 %s138, 1
        %s228 = scalar_lea.sflag [#allocation4], %s227
        %s229 = sand.u32 %s138, 1
        %s230 = scalar_lea.vmem [#allocation3], %s229
        %s231 = smul.u32 4, %s20
        %s232 = ssub.s32 13, %s231
        %p233 = scmp.lt.s32.totalorder %s232, 4
        %s234 = scalar_select %p233, %s232, 4
        %s235 = smul.u32 128, %s234
        %p236 = scmp.lt.s32.totalorder %s231, 12
        %s237 = scalar_select %p236, %s231, 12
        %s238 = smul.addr %s237, 8
        %s239 = scalar_lea.vmem %s0, %s238
        %s240 = smul.u32 4, %s20
        %s241 = ssub.s32 13, %s240
        %p242 = scmp.lt.s32.totalorder %s241, 4
        %s243 = scalar_select %p242, %s241, 4
        %s244 = smul.u32 128, %s243
        %v245 = vld [vmem:[%s239] sm:$0xff]
        %v246 = vld [vmem:[%s239 + $0x8] sm:$0xff]
        %v247 = vld [vmem:[%s239 + $0x10] sm:$0xff]
        %v248 = vld [vmem:[%s239 + $0x18] sm:$0xff]
        %v249 = vld [vmem:[%s1] sm:$0xff]
        %v250 = vld [vmem:[%s1 + $0x8] sm:$0xff]
        %v251 = vld [vmem:[%s1 + $0x10] sm:$0xff]
        %v252 = vld [vmem:[%s1 + $0x18] sm:$0xff]
        %v253 = vld [vmem:[%s2] sm:$0x1]
        %v255 = vlaneseq
        %v256 = vshrl.u32 %v255, 7
        %v257 = vsub.s32 0, %v256
        %v258 = vrot.slane %v253, %v257
        %vm260 = vcmask 261120
        %v262 = vsel %vm260, %v245, 0
        %v265 = vsel %vm260, %v246, 0
        %v268 = vsel %vm260, %v247, 0
        %v271 = vsel %vm260, %v248, 0
        %273 = vmatprep.subr.mxu0 0.0
        %274 = vmatpush1.msra.mxu0 %v249
        %275 = vmatprep.subr.mxu0 0.0
        %276 = vmatpush1.msra.mxu0 %v250
        %277 = vmatprep.subr.mxu0 0.0
        %278 = vmatpush1.msra.mxu0 %v251
        %279 = vmatprep.subr.mxu0 0.0
        %280 = vmatpush1.msra.mxu0 %v252
        %281 = vmatprep.subr.mxu0 0.0
        %282 = vmatpush1.msra.mxu0 0.0
        %283 = vmatprep.subr.mxu0 0.0
        %284 = vmatpush1.msra.mxu0 0.0
        %285 = vmatprep.subr.mxu0 0.0
        %286 = vmatpush1.msra.mxu0 0.0
        %287 = vmatprep.subr.mxu0 0.0
        %288 = vmatpush1.msra.mxu0 0.0
        %289 = vmatprep.subr.mxu0 0.0
        %290 = vmatpush1.msra.mxu0 0.0
        %291 = vmatprep.subr.mxu0 0.0
        %292 = vmatpush1.msra.mxu0 0.0
        %293 = vmatprep.subr.mxu0 0.0
        %294 = vmatpush1.msra.mxu0 0.0
        %295 = vmatprep.subr.mxu0 0.0
        %296 = vmatpush1.msra.mxu0 0.0
        %297 = vmatprep.subr.mxu0 0.0
        %298 = vmatpush1.msra.mxu0 0.0
        %299 = vmatprep.subr.mxu0 0.0
        %300 = vmatpush1.msra.mxu0 0.0
        %301 = vmatprep.subr.mxu0 0.0
        %302 = vmatpush1.msra.mxu0 0.0
        %303 = vmatprep.subr.mxu0 0.0
        %304 = vmatpush1.msra.mxu0 0.0
        %305 = vmatprep.subr.mxu0 0.0
        %306 = vmatpush1.msra.mxu0 0.0
        %307 = vmatprep.subr.mxu0 0.0
        %308 = vmatpush1.msra.mxu0 0.0
        %309 = vmatprep.subr.mxu0 0.0
        %310 = vmatpush1.msra.mxu0 0.0
        %311 = vmatprep.subr.mxu0 0.0
        %312 = vmatpush1.msra.mxu0 0.0
        %313 = vmatprep.subr.mxu0 0.0
        %314 = vmatpush1.msra.mxu0 0.0
        %315 = vmatprep.subr.mxu0 0.0
        %316 = vmatpush1.msra.mxu0 0.0
        %317 = vmatprep.subr.mxu0 0.0
        %318 = vmatpush1.msra.mxu0 0.0
        %319 = vmatprep.subr.mxu0 0.0
        %320 = vmatpush1.msra.mxu0 0.0
        %321 = vmatprep.subr.mxu0 0.0
        %322 = vmatpush1.msra.mxu0 0.0
        %323 = vmatprep.subr.mxu0 0.0
        %324 = vmatpush1.msra.mxu0 0.0
        %325 = vmatprep.subr.mxu0 0.0
        %326 = vmatpush1.msra.mxu0 0.0
        %327 = vmatprep.subr.mxu0 0.0
        %328 = vmatpush1.msra.mxu0 0.0
        %329 = vmatprep.subr.mxu0 0.0
        %330 = vmatpush1.msra.mxu0 0.0
        %331 = vmatprep.subr.mxu0 0.0
        %332 = vmatpush1.msra.mxu0 0.0
        %333 = vmatprep.subr.mxu0 0.0
        %334 = vmatpush1.msra.mxu0 0.0
        %335 = vmatprep.subr.mxu0 0.0
        %336 = vmatpush1.msra.mxu0 0.0
        %337 = vmatprep.mubr.f32.mxu0 0.0
        %338 = vmatmul.mubr.f32.gmra.mrb[0].mxu0 %v262
        %v339 = vpop.f32.mrb[0].mxu0
        %v340 = vadd.f32 %v258, %v339
        %v341 = vpop.f32.mrb[0].mxu0
        %342 = vmatprep.mubr.f32.mxu0 0.0
        %343 = vmatmul.mubr.f32.gmra.mrb[0].mxu0 %v265
        %v344 = vpop.f32.mrb[0].mxu0
        %v345 = vadd.f32 %v258, %v344
        %v346 = vpop.f32.mrb[0].mxu0
        %347 = vmatprep.mubr.f32.mxu0 0.0
        %348 = vmatmul.mubr.f32.gmra.mrb[0].mxu0 %v268
        %v349 = vpop.f32.mrb[0].mxu0
        %v350 = vadd.f32 %v258, %v349
        %v351 = vpop.f32.mrb[0].mxu0
        %352 = vmatprep.mubr.f32.mxu0 0.0
        %353 = vmatmul.mubr.f32.gmra.mrb[0].mxu0 %v271
        %v354 = vpop.f32.mrb[0].mxu0
        %v355 = vadd.f32 %v258, %v354
        %v356 = vpop.f32.mrb[0].mxu0
        %357 = vdwg.mxu0
        %vm358 = vcmp.ge.f32.partialorder %v340, 0.0
        %vm359 = vcmp.ge.f32.partialorder %v345, 0.0
        %vm360 = vcmp.ge.f32.partialorder %v350, 0.0
        %vm361 = vcmp.ge.f32.partialorder %v355, 0.0
        %v362 = vmul.f32 %v340, 0.1
        %v363 = vmul.f32 %v345, 0.1
        %v364 = vmul.f32 %v350, 0.1
        %v365 = vmul.f32 %v355, 0.1
        %v366 = vsel %vm358, %v340, %v362
        %v367 = vsel %vm359, %v345, %v363
        %v368 = vsel %vm360, %v350, %v364
        %v369 = vsel %vm361, %v355, %v365
        %v370 = vld [vmem:[%s3] sm:$0x1]
        %s371 = sld [smem:[#allocation2]]
        %v372 = vstv %s371
        %vm373 = vcmask 130048
        %v375 = vsel %vm373, %v370, 0
        %v378 = vsel %vm373, %v366, 0
        %v381 = vsel %vm373, %v367, 0
        %v384 = vsel %vm373, %v368, 0
        %v387 = vsel %vm373, %v369, 0
        %389 = vmatprep.subr.mxu0 0.0
        %390 = vmatpush1.xpose.msra.mxu0 %v378
        %391 = vmatprep.subr.mxu0 0.0
        %392 = vmatpush1.xpose.msra.mxu0 %v381
        %393 = vmatprep.subr.mxu0 0.0
        %394 = vmatpush1.xpose.msra.mxu0 %v384
        %395 = vmatprep.subr.mxu0 0.0
        %396 = vmatpush1.xpose.msra.mxu0 %v387
        %397 = vmatprep.subr.mxu0 0.0
        %398 = vmatpush1.xpose.msra.mxu0 0.0
        %399 = vmatprep.subr.mxu0 0.0
        %400 = vmatpush1.xpose.msra.mxu0 0.0
        %401 = vmatprep.subr.mxu0 0.0
        %402 = vmatpush1.xpose.msra.mxu0 0.0
        %403 = vmatprep.subr.mxu0 0.0
        %404 = vmatpush1.xpose.msra.mxu0 0.0
        %405 = vmatprep.subr.mxu0 0.0
        %406 = vmatpush1.xpose.msra.mxu0 0.0
        %407 = vmatprep.subr.mxu0 0.0
        %408 = vmatpush1.xpose.msra.mxu0 0.0
        %409 = vmatprep.subr.mxu0 0.0
        %410 = vmatpush1.xpose.msra.mxu0 0.0
        %411 = vmatprep.subr.mxu0 0.0
        %412 = vmatpush1.xpose.msra.mxu0 0.0
        %413 = vmatprep.subr.mxu0 0.0
        %414 = vmatpush1.xpose.msra.mxu0 0.0
        %415 = vmatprep.subr.mxu0 0.0
        %416 = vmatpush1.xpose.msra.mxu0 0.0
        %417 = vmatprep.subr.mxu0 0.0
        %418 = vmatpush1.xpose.msra.mxu0 0.0
        %419 = vmatprep.subr.mxu0 0.0
        %420 = vmatpush1.xpose.msra.mxu0 0.0
        %421 = vmatprep.subr.mxu0 0.0
        %422 = vmatpush1.xpose.msra.mxu0 0.0
        %423 = vmatprep.subr.mxu0 0.0
        %424 = vmatpush1.xpose.msra.mxu0 0.0
        %425 = vmatprep.subr.mxu0 0.0
        %426 = vmatpush1.xpose.msra.mxu0 0.0
        %427 = vmatprep.subr.mxu0 0.0
        %428 = vmatpush1.xpose.msra.mxu0 0.0
        %429 = vmatprep.subr.mxu0 0.0
        %430 = vmatpush1.xpose.msra.mxu0 0.0
        %431 = vmatprep.subr.mxu0 0.0
        %432 = vmatpush1.xpose.msra.mxu0 0.0
        %433 = vmatprep.subr.mxu0 0.0
        %434 = vmatpush1.xpose.msra.mxu0 0.0
        %435 = vmatprep.subr.mxu0 0.0
        %436 = vmatpush1.xpose.msra.mxu0 0.0
        %437 = vmatprep.subr.mxu0 0.0
        %438 = vmatpush1.xpose.msra.mxu0 0.0
        %439 = vmatprep.subr.mxu0 0.0
        %440 = vmatpush1.xpose.msra.mxu0 0.0
        %441 = vmatprep.subr.mxu0 0.0
        %442 = vmatpush1.xpose.msra.mxu0 0.0
        %443 = vmatprep.subr.mxu0 0.0
        %444 = vmatpush1.xpose.msra.mxu0 0.0
        %445 = vmatprep.subr.mxu0 0.0
        %446 = vmatpush1.xpose.msra.mxu0 0.0
        %447 = vmatprep.subr.mxu0 0.0
        %448 = vmatpush1.xpose.msra.mxu0 0.0
        %449 = vmatprep.subr.mxu0 0.0
        %450 = vmatpush1.xpose.msra.mxu0 0.0
        %451 = vmatprep.subr.mxu0 0.0
        %452 = vmatpush1.xpose.msra.mxu0 0.0
        %453 = vmatprep.mubr.f32.mxu0 0.0
        %454 = vmatmul.mubr.f32.gmra.mrb[0].mxu0 %v375
        %v455 = vpop.f32.mrb[0].mxu0
        %v456 = vadd.f32 %v372, %v455
        %v457 = vpop.f32.mrb[0].mxu0
        %458 = vdwg.mxu0
        %v459 = vsub.f32 0.0, %v456
        %v460 = vmul.f32 %v459, 1.442695
        %v461 = vpow.pop %v460
        %v462 = vadd.f32 %v461, 1.0
        %v463 = vrcp.pop %v462
        %v464 = vmul.f32 1.0, %v463
        %vm465 = vcmask 253952
        %466 = vst.msk [vmem:[%s230] sm:$0x1] %vm465, %v464
        %s467 = sand.u32 %s138, 1
        %s468 = scalar_lea.sflag [#allocation4], %s467
        %s469 = sand.u32 %s138, 1
        %s470 = scalar_lea.vmem [#allocation3], %s469
        // Predicated region
        $region41: #{tpu_custom_call.1} parent=39 // pred_check
          %p471 = pneg %p148
        $region42: #{tpu_custom_call.1} parent=39 // pred_check_branch
          %473 = sbr.rel (%p471) target = $region44
        $region43: #{tpu_custom_call.1} parent=39 // pred_region
          %s475 = ssub.s32 16, 16
          %476 = vsyncadd %s468, %s475
          %s477 = smul.addr %s20, 16
          %s478 = scalar_lea.hbm %s5, %s477
          %s480 = sshll.u32 %s470, 4
          %s481 = int_to_ptr.vmem [resolvable:$true] %s480
          %483 = dma.vmem_to_hbm [thread:$0]  %s481, 16, %s478, %s468
        $region44: #{tpu_custom_call.1} parent=39 // pred_fallthru
          _
      $region40: #{tpu_custom_call.1} parent=5 // pred_fallthru
        _
      %p484 = scmp.le.s32.totalorder 2, %s15
      // Predicated region
      $region45: #{tpu_custom_call.1} parent=5 // pred_check
        %p485 = pneg %p484
      $region46: #{tpu_custom_call.1} parent=5 // pred_check_branch
        %487 = sbr.rel (%p485) target = $region48
      $region47: #{tpu_custom_call.1} parent=5 // pred_region
        %s488 = ssub.s32 %s15, 2
        // Predicated region
        $region49: #{tpu_custom_call.1} parent=47 // pred_check
          %p489 = pneg %p154
        $region50: #{tpu_custom_call.1} parent=47 // pred_check_branch
          %491 = sbr.rel (%p489) target = $region52
        $region51: #{tpu_custom_call.1} parent=47 // pred_region
          %s492 = sand.u32 %s139, 1
          %s493 = scalar_lea.sflag [#allocation4], %s492
          %s494 = sand.u32 %s139, 1
          %s495 = scalar_lea.vmem [#allocation3], %s494
          %496 = dma.done %s493, 16
        $region52: #{tpu_custom_call.1} parent=47 // pred_fallthru
          _
      $region48: #{tpu_custom_call.1} parent=5 // pred_fallthru
        _
    $region6: #{tpu_custom_call.1} parent=1 // loop_footer
      %s19 = sadd.s32 1, %s15
    $region7: #{tpu_custom_call.1} parent=1 // loop_footer_branch
      %14 = sbr.rel target = $region3
    $region8: #{tpu_custom_call.1} parent=1 // loop_exit
      _
    %497 = vsyncpa [#allocation4], 1
    %s498 = scalar_lea.sflag [#allocation4], 1
    %499 = vsyncpa %s498, 1

</llo_original>
